<compile_context>
chip_gen: v7x
topology: tpu7x:2x2x1
jax: 0.10.0
libtpu: 0.0.40
codegen_flags: <defaults>
</compile_context>

<pallas_src>
import functools

import jax
import jax.numpy as jnp
from jax.experimental import pallas as pl
from jax.experimental.pallas import tpu as pltpu


def _scse_kernel(x_ref, w1t_ref, b1_ref, w2t_ref, b2_ref, ws_ref, bs_ref,
                 out_ref, *, inv_hw):
    """Fused scSE on one (Bt, C, HW) block.

    x_ref   : (Bt, C, HW)   input tile (HW = true spatial size, possibly unaligned)
    w1t_ref : (C, Cr)       cSE squeeze weight, pre-transposed
    b1_ref  : (1, Cr)
    w2t_ref : (Cr, C)       cSE excite weight, pre-transposed
    b2_ref  : (1, C)
    ws_ref  : (C, 1)        sSE weight as a column
    bs_ref  : (1,)          sSE bias (SMEM scalar)
    """
    x = x_ref[...]                                       # (Bt, C, HW), native dtype

    # ---- cSE branch (batched over Bt so the MXU gets Bt rows, not 1) ----
    z = jnp.sum(x.astype(jnp.float32), axis=-1) * inv_hw  # (Bt, C) mean over HW
    h = jnp.dot(z, w1t_ref[...],
                preferred_element_type=jnp.float32)        # (Bt, Cr)
    h = jnp.maximum(h + b1_ref[...], 0.0)                  # ReLU
    s = jnp.dot(h, w2t_ref[...],
                preferred_element_type=jnp.float32)        # (Bt, C)
    s_c = jax.nn.sigmoid(s + b2_ref[...]).astype(x.dtype)[:, :, None]  # (Bt, C, 1)

    # ---- sSE branch on VPU/XLU (x already in vregs; avoids a 1-row MXU op).
    # If profiling on v7x shows the VALU slot saturating, this reduce can move
    # back onto the MXU as a batched dot_general; on v5e/v6e the kernel is
    # clearly HBM-bound and this is free filler.
    ws = ws_ref[...].astype(jnp.float32)                   # (C, 1)
    s_s = jnp.sum(x.astype(jnp.float32) * ws[None, :, :],
                  axis=1, keepdims=True)                   # (Bt, 1, HW)
    s_s = jax.nn.sigmoid(s_s + bs_ref[0]).astype(x.dtype)  # spatial gate

    # ---- combine (stays in the input dtype; bf16 is not upcast) ----
    y = jnp.maximum(x * s_c, x * s_s)
    out_ref[...] = y.astype(out_ref.dtype)


def _tpu_tuning():
    """Return (vmem_capacity_bytes, tensorcores_per_chip, target_block_bytes).

    v7x: 64 MiB VMEM per TC, 2 TCs/chip  -> smaller blocks, even grid split.
    v5e/v6e: 128 MiB VMEM, 1 TC/chip     -> bigger blocks, no grid constraint.
    Falls back to conservative (v7x-safe) values if the query fails.
    """
    vmem_bytes = 64 << 20
    try:
        info = pltpu.get_tpu_info()
        vmem_bytes = int(getattr(info, "vmem_capacity_bytes", vmem_bytes))
    except Exception:
        pass
    if vmem_bytes <= (64 << 20):
        return vmem_bytes, 2, (4 << 20)       # v7x-like
    return vmem_bytes, 1, (8 << 20)           # v5e / v6e


def _pick_batch_tile(n, bytes_per_sample, target_block_bytes, num_tc):
    """Pick the batch tile Bt (not necessarily a divisor of n).

    Largest Bt whose x block stays within target_block_bytes. On 2-TC chips
    (v7x) also keep the grid length >= num_tc and prefer it to be a multiple
    of num_tc so both TensorCores get equal work; single-TC chips (v5e/v6e)
    get no such constraint (the grid is just a serial loop there).
    """
    bt_cap = max(1, target_block_bytes // max(1, bytes_per_sample))
    bt = max(1, min(n, int(bt_cap)))
    if num_tc >= 2 and n >= num_tc:
        bt = min(bt, max(1, n // num_tc))
        while bt > 1 and (((n + bt - 1) // bt) % num_tc) != 0:
            bt -= 1
    return bt


def scse_layer(x_nchw, params):
    """x_nchw: (N, C, H, W). Returns (N, C, H, W)."""
    N, C, H, W = x_nchw.shape
    HW = H * W
    x = x_nchw.reshape(N, C, HW)

    w1, b1, w2, b2, ws, bs = params
    Cr = w1.shape[0]
    # Pre-transpose / reshape the tiny 1x1-conv params once in the wrapper.
    w1t = jnp.asarray(w1).T                  # (C, Cr)
    w2t = jnp.asarray(w2).T                  # (Cr, C)
    b1r = jnp.asarray(b1).reshape(1, Cr)
    b2r = jnp.asarray(b2).reshape(1, C)
    wsc = jnp.asarray(ws).reshape(C, 1)
    bss = jnp.asarray(bs).reshape(1)         # 1-D SMEM scalar (avoids 2-D SMEM padding)

    vmem_bytes, num_tc, target_block_bytes = _tpu_tuning()

    itemsize = jnp.dtype(x.dtype).itemsize
    bytes_per_sample = C * HW * itemsize
    bt = _pick_batch_tile(N, bytes_per_sample, target_block_bytes, num_tc)
    num_blocks = (N + bt - 1) // bt           # ragged tail block is masked by Pallas

    block_bytes = bt * C * HW * itemsize
    block_f32 = bt * C * HW * 4
    # in + out double-buffered (4x block) + block-sized f32 temporaries
    # (f32 upcast, x*ws product, x*s_c, x*s_s, y) + params / margin.
    vmem_needed = 4 * block_bytes + 5 * block_f32 + (2 << 20)
    vmem_cap = max(16 << 20, vmem_bytes - (8 << 20))   # headroom below physical VMEM
    vmem_limit = int(min(max(32 << 20, vmem_needed), vmem_cap))
    # TODO(synk): for very large per-sample feature maps (C*HW*itemsize approaching
    # v7x's 64 MiB VMEM), switch to an HW-tiled two-pass variant (pass 1 accumulates
    # channel sums for the cSE gate, pass 2 applies gates + sSE per spatial tile).

    kernel = functools.partial(_scse_kernel, inv_hw=1.0 / float(HW))

    out = pl.pallas_call(
        kernel,
        out_shape=jax.ShapeDtypeStruct((N, C, HW), x.dtype),
        grid_spec=pltpu.PrefetchScalarGridSpec(
            num_scalar_prefetch=0,
            grid=(num_blocks,),
            in_specs=[
                pl.BlockSpec((bt, C, HW), lambda n: (n, 0, 0)),     # x
                pl.BlockSpec((C, Cr),     lambda n: (0, 0)),        # w1^T
                pl.BlockSpec((1, Cr),     lambda n: (0, 0)),        # b1
                pl.BlockSpec((Cr, C),     lambda n: (0, 0)),        # w2^T
                pl.BlockSpec((1, C),      lambda n: (0, 0)),        # b2
                pl.BlockSpec((C, 1),      lambda n: (0, 0)),        # ws (column)
                pl.BlockSpec(memory_space=pltpu.MemorySpace.SMEM),  # bs scalar
            ],
            out_specs=pl.BlockSpec((bt, C, HW), lambda n: (n, 0, 0)),
        ),
        compiler_params=pltpu.CompilerParams(
            dimension_semantics=("parallel",),
            vmem_limit_bytes=vmem_limit),
    )(x, w1t, b1r, w2t, b2r, wsc, bss)

    return out.reshape(N, C, H, W)


def init_params(key, channel, reduction=16):
    """Deterministic synthetic parameters matching the PyTorch module shapes.

    PyTorch shapes:
      cSE conv1: weight (C//r, C, 1, 1), bias (C//r,)
      cSE conv2: weight (C, C//r, 1, 1), bias (C,)
      sSE conv : weight (1, C, 1, 1),    bias (1,)
    We store 1x1 conv weights as 2-D matrices (out, in).
    """
    cr = channel // reduction
    k1, k2, k3, k4, k5, k6 = jax.random.split(key, 6)
    w1 = jax.random.normal(k1, (cr, channel), jnp.float32) * 0.1
    b1 = jax.random.normal(k2, (cr, 1), jnp.float32) * 0.1
    w2 = jax.random.normal(k3, (channel, cr), jnp.float32) * 0.1
    b2 = jax.random.normal(k4, (channel, 1), jnp.float32) * 0.1
    ws = jax.random.normal(k5, (1, channel), jnp.float32) * 0.1
    bs = jax.random.normal(k6, (1, 1), jnp.float32) * 0.1
    return (w1, b1, w2, b2, ws, bs)


def scse_reference(x_nchw, params):
    """Pure-JAX reference mirroring the PyTorch forward."""
    w1, b1, w2, b2, ws, bs = params
    # cSE
    z = jnp.mean(x_nchw, axis=(2, 3))                              # (N, C)
    h = jnp.maximum(z @ w1.T + b1[:, 0], 0.0)                      # (N, Cr)
    s_c = jax.nn.sigmoid(h @ w2.T + b2[:, 0])                      # (N, C)
    y1 = x_nchw * s_c[:, :, None, None]
    # sSE
    s_s = jax.nn.sigmoid(
        jnp.einsum("nchw,c->nhw", x_nchw, ws[0]) + bs[0, 0])       # (N, H, W)
    y2 = x_nchw * s_s[:, None, :, :]
    return jnp.maximum(y1, y2)


if __name__ == "__main__":
    key = jax.random.PRNGKey(0)
    kx, kp = jax.random.split(key)

    N, C, H, W = 2, 32, 16, 16      # channels=32, reduction=16 -> hidden 2
    x = jax.random.normal(kx, (N, C, H, W), jnp.float32)
    params = init_params(kp, C, reduction=16)

    out = scse_layer(x, params)
    out = jax.block_until_ready(out)

    ref = scse_reference(x, params)
    assert out.shape == (N, C, H, W)
    assert jnp.allclose(out, ref, atol=1e-4, rtol=1e-4), "mismatch vs reference"

    print("KERNEL_OK")
</pallas_src>

<mosaic_0001>
module attributes {stable_mosaic.version = 11 : i64} {
  func.func @_scse_kernel(%arg0: i32, %arg1: memref<1x32x256xf32, #tpu.memory_space<vmem>>, %arg2: memref<32x2xf32, #tpu.memory_space<vmem>>, %arg3: memref<1x2xf32, #tpu.memory_space<vmem>>, %arg4: memref<2x32xf32, #tpu.memory_space<vmem>>, %arg5: memref<1x32xf32, #tpu.memory_space<vmem>>, %arg6: memref<32x1xf32, #tpu.memory_space<vmem>>, %arg7: memref<1xf32, #tpu.memory_space<smem>>, %arg8: memref<1x32x256xf32, #tpu.memory_space<vmem>>) attributes {dimension_semantics = [#tpu.dimension_semantics<parallel>], iteration_bounds = array<i64: 2>, scalar_prefetch = 0 : i64, scratch_operands = 0 : i64, tpu.core_type = #tpu.core_type<tc>, window_params = [{transform_indices = @transform_0, window_bounds = array<i64: 1, 32, 256>}, {pipeline_mode = #tpu.pipeline_mode<synchronous>, transform_indices = @transform_1, window_bounds = array<i64: 32, 2>}, {pipeline_mode = #tpu.pipeline_mode<synchronous>, transform_indices = @transform_2, window_bounds = array<i64: 1, 2>}, {pipeline_mode = #tpu.pipeline_mode<synchronous>, transform_indices = @transform_3, window_bounds = array<i64: 2, 32>}, {pipeline_mode = #tpu.pipeline_mode<synchronous>, transform_indices = @transform_4, window_bounds = array<i64: 1, 32>}, {pipeline_mode = #tpu.pipeline_mode<synchronous>, transform_indices = @transform_5, window_bounds = array<i64: 32, 1>}, {transform_indices = @transform_6, window_bounds = array<i64: 1>}, {transform_indices = @transform_7, window_bounds = array<i64: 1, 32, 256>}]} {
    %c0 = arith.constant 0 : index
    %c0_0 = arith.constant 0 : index
    %c0_1 = arith.constant 0 : index
    %0 = vector.load %arg1[%c0, %c0_0, %c0_1] : memref<1x32x256xf32, #tpu.memory_space<vmem>>, vector<1x32x256xf32>
    %cst = arith.constant dense<0.000000e+00> : vector<1x32xf32>
    %1 = vector.multi_reduction <add>, %0, %cst [2] : vector<1x32x256xf32> to vector<1x32xf32>
    %cst_2 = arith.constant 3.906250e-03 : f32
    %2 = vector.broadcast %cst_2 : f32 to vector<1x32xf32>
    %3 = arith.mulf %1, %2 : vector<1x32xf32>
    %c0_3 = arith.constant 0 : index
    %c0_4 = arith.constant 0 : index
    %4 = vector.load %arg2[%c0_3, %c0_4] : memref<32x2xf32, #tpu.memory_space<vmem>>, vector<32x2xf32>
    %cst_5 = arith.constant dense<0.000000e+00> : vector<1x2xf32>
    %5 = tpu.matmul %3, %4, %cst_5 {dimension_numbers = #tpu.dot_dimension_numbers<[1], [0], [0], [1], [0, 0, 1, 1], [], []>} : vector<1x32xf32>, vector<32x2xf32>, vector<1x2xf32> -> vector<1x2xf32>
    %c0_6 = arith.constant 0 : index
    %c0_7 = arith.constant 0 : index
    %6 = vector.load %arg3[%c0_6, %c0_7] : memref<1x2xf32, #tpu.memory_space<vmem>>, vector<1x2xf32>
    %7 = arith.addf %5, %6 : vector<1x2xf32>
    %cst_8 = arith.constant 0.000000e+00 : f32
    %8 = vector.broadcast %cst_8 : f32 to vector<1x2xf32>
    %9 = arith.maximumf %7, %8 : vector<1x2xf32>
    %c0_9 = arith.constant 0 : index
    %c0_10 = arith.constant 0 : index
    %10 = vector.load %arg4[%c0_9, %c0_10] : memref<2x32xf32, #tpu.memory_space<vmem>>, vector<2x32xf32>
    %cst_11 = arith.constant dense<0.000000e+00> : vector<1x32xf32>
    %11 = tpu.matmul %9, %10, %cst_11 {dimension_numbers = #tpu.dot_dimension_numbers<[1], [0], [0], [1], [0, 0, 1, 1], [], []>} : vector<1x2xf32>, vector<2x32xf32>, vector<1x32xf32> -> vector<1x32xf32>
    %c0_12 = arith.constant 0 : index
    %c0_13 = arith.constant 0 : index
    %12 = vector.load %arg5[%c0_12, %c0_13] : memref<1x32xf32, #tpu.memory_space<vmem>>, vector<1x32xf32>
    %13 = arith.addf %11, %12 : vector<1x32xf32>
    %14 = arith.negf %13 : vector<1x32xf32>
    %15 = math.exp %14 : vector<1x32xf32>
    %cst_14 = arith.constant 1.000000e+00 : f32
    %16 = vector.broadcast %cst_14 : f32 to vector<1x32xf32>
    %17 = arith.addf %16, %15 : vector<1x32xf32>
    %18 = arith.divf %16, %17 : vector<1x32xf32>
    %19 = vector.shape_cast %18 : vector<1x32xf32> to vector<1x32x1xf32>
    %c0_15 = arith.constant 0 : index
    %c0_16 = arith.constant 0 : index
    %20 = vector.load %arg6[%c0_15, %c0_16] : memref<32x1xf32, #tpu.memory_space<vmem>>, vector<32x1xf32>
    %21 = vector.shape_cast %20 : vector<32x1xf32> to vector<1x32x1xf32>
    %22 = vector.broadcast %21 : vector<1x32x1xf32> to vector<1x32x256xf32>
    %23 = arith.mulf %0, %22 : vector<1x32x256xf32>
    %cst_17 = arith.constant dense<0.000000e+00> : vector<1x256xf32>
    %24 = vector.multi_reduction <add>, %23, %cst_17 [1] : vector<1x32x256xf32> to vector<1x256xf32>
    %25 = vector.shape_cast %24 : vector<1x256xf32> to vector<1x1x256xf32>
    %c0_18 = arith.constant 0 : index
    %26 = memref.load %arg7[%c0_18] : memref<1xf32, #tpu.memory_space<smem>>
    %27 = vector.broadcast %26 : f32 to vector<1x1x256xf32>
    %28 = arith.addf %25, %27 : vector<1x1x256xf32>
    %29 = arith.negf %28 : vector<1x1x256xf32>
    %30 = math.exp %29 : vector<1x1x256xf32>
    %cst_19 = arith.constant 1.000000e+00 : f32
    %31 = vector.broadcast %cst_19 : f32 to vector<1x1x256xf32>
    %32 = arith.addf %31, %30 : vector<1x1x256xf32>
    %33 = arith.divf %31, %32 : vector<1x1x256xf32>
    %34 = vector.broadcast %19 : vector<1x32x1xf32> to vector<1x32x256xf32>
    %35 = arith.mulf %0, %34 : vector<1x32x256xf32>
    %36 = vector.broadcast %33 : vector<1x1x256xf32> to vector<1x32x256xf32>
    %37 = arith.mulf %0, %36 : vector<1x32x256xf32>
    %38 = arith.maximumf %35, %37 : vector<1x32x256xf32>
    %c0_20 = arith.constant 0 : index
    %c0_21 = arith.constant 0 : index
    %c0_22 = arith.constant 0 : index
    %39 = vector.load %arg8[%c0_20, %c0_21, %c0_22] : memref<1x32x256xf32, #tpu.memory_space<vmem>>, vector<1x32x256xf32>
    tpu.vector_store %arg8[%c0_20, %c0_21, %c0_22], %38 {strides = array<i32>} : memref<1x32x256xf32, #tpu.memory_space<vmem>>, vector<1x32x256xf32>,
    return
  }
  func.func @transform_0(%arg0: i32) -> (i32, i32, i32) {
    %c0_i32 = arith.constant 0 : i32
    %c0_i32_0 = arith.constant 0 : i32
    %c0_i32_1 = arith.constant 0 : i32
    return %arg0, %c0_i32, %c0_i32_0 : i32, i32, i32
  }
  func.func @transform_1(%arg0: i32) -> (i32, i32) {
    %c0_i32 = arith.constant 0 : i32
    %c0_i32_0 = arith.constant 0 : i32
    %c0_i32_1 = arith.constant 0 : i32
    return %c0_i32, %c0_i32_0 : i32, i32
  }
  func.func @transform_2(%arg0: i32) -> (i32, i32) {
    %c0_i32 = arith.constant 0 : i32
    %c0_i32_0 = arith.constant 0 : i32
    %c0_i32_1 = arith.constant 0 : i32
    return %c0_i32, %c0_i32_0 : i32, i32
  }
  func.func @transform_3(%arg0: i32) -> (i32, i32) {
    %c0_i32 = arith.constant 0 : i32
    %c0_i32_0 = arith.constant 0 : i32
    %c0_i32_1 = arith.constant 0 : i32
    return %c0_i32, %c0_i32_0 : i32, i32
  }
  func.func @transform_4(%arg0: i32) -> (i32, i32) {
    %c0_i32 = arith.constant 0 : i32
    %c0_i32_0 = arith.constant 0 : i32
    %c0_i32_1 = arith.constant 0 : i32
    return %c0_i32, %c0_i32_0 : i32, i32
  }
  func.func @transform_5(%arg0: i32) -> (i32, i32) {
    %c0_i32 = arith.constant 0 : i32
    %c0_i32_0 = arith.constant 0 : i32
    %c0_i32_1 = arith.constant 0 : i32
    return %c0_i32, %c0_i32_0 : i32, i32
  }
  func.func @transform_6(%arg0: i32) -> i32 {
    %c0_i32 = arith.constant 0 : i32
    %c0_i32_0 = arith.constant 0 : i32
    return %c0_i32 : i32
  }
  func.func @transform_7(%arg0: i32) -> (i32, i32, i32) {
    %c0_i32 = arith.constant 0 : i32
    %c0_i32_0 = arith.constant 0 : i32
    %c0_i32_1 = arith.constant 0 : i32
    return %arg0, %c0_i32, %c0_i32_0 : i32, i32, i32
  }
}

</mosaic_0001>

<llo_original>
// kernel: tpu_custom_call.1
$region0: #{tpu_custom_call.1}
  #allocation0 [shape = 'u32[]', space=smem, size = 0x4, offset = 0x4, fixed_abs, tag = 'smem constant byte address 0x4 - core index']
  #allocation1 [shape = 'u32[144,128]{1,0:T(1,128)}', space=vmem, size = 0x12000, scoped, tag = 'internal scratch']
  #allocation2 [shape = 'f32[1]{0:T(128)S(6)}', space=smem, size = 0x200, scoped, tag = 'scoped memory for tpu_custom_call.1']
  %s0 = inlined_call_operand.hbm [shape: f32[2,32,256], index: 0, kind: input, shape index: {}]
  %s1 = inlined_call_operand.vmem [shape: f32[32,2], index: 1, kind: input, shape index: {}]
  %s2 = inlined_call_operand.vmem [shape: f32[1,2], index: 2, kind: input, shape index: {}]
  %s3 = inlined_call_operand.vmem [shape: f32[2,32], index: 3, kind: input, shape index: {}]
  %s4 = inlined_call_operand.vmem [shape: f32[1,32], index: 4, kind: input, shape index: {}]
  %s5 = inlined_call_operand.vmem [shape: f32[32,1], index: 5, kind: input, shape index: {}]
  %s6 = inlined_call_operand.<no memory space> [shape: f32[1], index: 6, kind: input, shape index: {}]
  %s7 = inlined_call_operand.hbm [shape: f32[2,32,256], index: 7, kind: output, shape index: {}]
  %s8 = sld [smem:[#allocation0]]
  $region65: #{tpu_custom_call.1} parent=0
    _
  %s10 = ssub.s32 1, %s8
  %s11 = scalar_select 0, %s10, %s8
  %12 = sst [smem:[#allocation2]] %s6
  $region1: #{tpu_custom_call.1} parent=0
    #allocation3 [shape = 'u8[65536]{0}', space=vmem, size = 0x10000, scoped, tag = 'input window, operand 0']
    #allocation4 [shape = 's32[2]{0}', space=sflag, size = 0x8, scoped, tag = 'scoped memory for tpu_custom_call.1']
    #allocation5 [shape = 's32[2]{0}', space=sflag, size = 0x8, scoped, tag = 'scoped memory for tpu_custom_call.1']
    #allocation6 [shape = 'u8[65536]{0}', space=vmem, size = 0x10000, scoped, tag = 'output window, operand 0']
    %13 = vsyncpa [#allocation4], 0
    %s14 = scalar_lea.sflag [#allocation4], 1
    %15 = vsyncpa %s14, 0
    %16 = vsyncpa [#allocation5], 0
    %s17 = scalar_lea.sflag [#allocation5], 1
    %18 = vsyncpa %s17, 0
    loop: start=0, step=1, limit=4
    $region2: #{tpu_custom_call.1} parent=1 // loop_pre_header
      _
    $region3: #{tpu_custom_call.1} parent=1 // loop_header
      %s20 = sphi 0, %s24
      %p21 = scmp.ge.s32.totalorder %s20, 4
      %s30 = sphi 0, %s32
      %s33 = sphi 0, %s30
      %s34 = sphi 0, %s33
      %s50 = sphi 0, %s34
      %s54 = sphi 0, %s54
      %s56 = sphi 0, %s54
      %s57 = sphi 0, %s56
      %s71 = sphi 0, %s57
      %s75 = sphi 0, %s75
      %s77 = sphi 0, %s75
      %s78 = sphi 0, %s77
      %s92 = sphi 0, %s78
      %s96 = sphi 0, %s96
      %s98 = sphi 0, %s96
      %s99 = sphi 0, %s98
      %s113 = sphi 0, %s99
      %s117 = sphi 0, %s117
      %s119 = sphi 0, %s117
      %s120 = sphi 0, %s119
      %s134 = sphi 0, %s120
      %s138 = sphi 0, %s138
      %s140 = sphi 0, %s138
      %s141 = sphi 0, %s140
      %s155 = sphi 0, %s141
      %s159 = sphi 0, %s159
      %s161 = sphi 0, %s159
      %s162 = sphi 0, %s161
      %s176 = sphi 0, %s162
      %s182 = sphi 0, %s184
      %s185 = sphi 0, %s182
      %s186 = sphi 0, %s185
      %s202 = sphi 0, %s186
    $region4: #{tpu_custom_call.1} parent=1 // loop_header_branch
      %23 = sbr.rel (%p21) target = $region8
    $region5: #{tpu_custom_call.1} parent=1 // loop_body
      %s25 = ssub.s32 %s20, 1
      %s26 = ssub.s32 %s20, 2
      %s27 = sadd.s32 %s20, 1
      %s28 = ssub.s32 %s20, %s27
      %p29 = scmp.eq.s32.totalorder %s28, 0
      %s31 = sadd.s32 %s30, 1
      %s32 = scalar_select %p29, %s30, %s31
      %p35 = pneg %p29
      %p36 = scmp.eq.s32.totalorder %s20, 1
      %p37 = por %p35, %p36
      %p38 = scmp.ne.s32.totalorder %s30, %s33
      %p39 = scmp.eq.s32.totalorder %s20, 0
      %p40 = por %p38, %p39
      %p41 = scmp.ne.s32.totalorder %s30, %s33
      %p42 = scmp.eq.s32.totalorder %s25, 1
      %p43 = por %p41, %p42
      %p44 = scmp.ne.s32.totalorder %s33, %s34
      %p45 = scmp.eq.s32.totalorder %s25, 0
      %p46 = por %p44, %p45
      %p47 = scmp.ne.s32.totalorder %s33, %s34
      %p48 = scmp.eq.s32.totalorder %s26, 1
      %p49 = por %p47, %p48
      %p51 = scmp.ne.s32.totalorder %s34, %s50
      %p52 = scmp.eq.s32.totalorder %s26, 0
      %p53 = por %p51, %p52
      %s55 = sadd.s32 %s54, 1
      %p58 = scmp.eq.s32.totalorder %s20, 1
      %p59 = scmp.ne.s32.totalorder %s54, %s56
      %p60 = scmp.eq.s32.totalorder %s20, 0
      %p61 = por %p59, %p60
      %p62 = scmp.ne.s32.totalorder %s54, %s56
      %p63 = scmp.eq.s32.totalorder %s25, 1
      %p64 = por %p62, %p63
      %p65 = scmp.ne.s32.totalorder %s56, %s57
      %p66 = scmp.eq.s32.totalorder %s25, 0
      %p67 = por %p65, %p66
      %p68 = scmp.ne.s32.totalorder %s56, %s57
      %p69 = scmp.eq.s32.totalorder %s26, 1
      %p70 = por %p68, %p69
      %p72 = scmp.ne.s32.totalorder %s57, %s71
      %p73 = scmp.eq.s32.totalorder %s26, 0
      %p74 = por %p72, %p73
      %s76 = sadd.s32 %s75, 1
      %p79 = scmp.eq.s32.totalorder %s20, 1
      %p80 = scmp.ne.s32.totalorder %s75, %s77
      %p81 = scmp.eq.s32.totalorder %s20, 0
      %p82 = por %p80, %p81
      %p83 = scmp.ne.s32.totalorder %s75, %s77
      %p84 = scmp.eq.s32.totalorder %s25, 1
      %p85 = por %p83, %p84
      %p86 = scmp.ne.s32.totalorder %s77, %s78
      %p87 = scmp.eq.s32.totalorder %s25, 0
      %p88 = por %p86, %p87
      %p89 = scmp.ne.s32.totalorder %s77, %s78
      %p90 = scmp.eq.s32.totalorder %s26, 1
      %p91 = por %p89, %p90
      %p93 = scmp.ne.s32.totalorder %s78, %s92
      %p94 = scmp.eq.s32.totalorder %s26, 0
      %p95 = por %p93, %p94
      %s97 = sadd.s32 %s96, 1
      %p100 = scmp.eq.s32.totalorder %s20, 1
      %p101 = scmp.ne.s32.totalorder %s96, %s98
      %p102 = scmp.eq.s32.totalorder %s20, 0
      %p103 = por %p101, %p102
      %p104 = scmp.ne.s32.totalorder %s96, %s98
      %p105 = scmp.eq.s32.totalorder %s25, 1
      %p106 = por %p104, %p105
      %p107 = scmp.ne.s32.totalorder %s98, %s99
      %p108 = scmp.eq.s32.totalorder %s25, 0
      %p109 = por %p107, %p108
      %p110 = scmp.ne.s32.totalorder %s98, %s99
      %p111 = scmp.eq.s32.totalorder %s26, 1
      %p112 = por %p110, %p111
      %p114 = scmp.ne.s32.totalorder %s99, %s113
      %p115 = scmp.eq.s32.totalorder %s26, 0
      %p116 = por %p114, %p115
      %s118 = sadd.s32 %s117, 1
      %p121 = scmp.eq.s32.totalorder %s20, 1
      %p122 = scmp.ne.s32.totalorder %s117, %s119
      %p123 = scmp.eq.s32.totalorder %s20, 0
      %p124 = por %p122, %p123
      %p125 = scmp.ne.s32.totalorder %s117, %s119
      %p126 = scmp.eq.s32.totalorder %s25, 1
      %p127 = por %p125, %p126
      %p128 = scmp.ne.s32.totalorder %s119, %s120
      %p129 = scmp.eq.s32.totalorder %s25, 0
      %p130 = por %p128, %p129
      %p131 = scmp.ne.s32.totalorder %s119, %s120
      %p132 = scmp.eq.s32.totalorder %s26, 1
      %p133 = por %p131, %p132
      %p135 = scmp.ne.s32.totalorder %s120, %s134
      %p136 = scmp.eq.s32.totalorder %s26, 0
      %p137 = por %p135, %p136
      %s139 = sadd.s32 %s138, 1
      %p142 = scmp.eq.s32.totalorder %s20, 1
      %p143 = scmp.ne.s32.totalorder %s138, %s140
      %p144 = scmp.eq.s32.totalorder %s20, 0
      %p145 = por %p143, %p144
      %p146 = scmp.ne.s32.totalorder %s138, %s140
      %p147 = scmp.eq.s32.totalorder %s25, 1
      %p148 = por %p146, %p147
      %p149 = scmp.ne.s32.totalorder %s140, %s141
      %p150 = scmp.eq.s32.totalorder %s25, 0
      %p151 = por %p149, %p150
      %p152 = scmp.ne.s32.totalorder %s140, %s141
      %p153 = scmp.eq.s32.totalorder %s26, 1
      %p154 = por %p152, %p153
      %p156 = scmp.ne.s32.totalorder %s141, %s155
      %p157 = scmp.eq.s32.totalorder %s26, 0
      %p158 = por %p156, %p157
      %s160 = sadd.s32 %s159, 1
      %p163 = scmp.eq.s32.totalorder %s20, 1
      %p164 = scmp.ne.s32.totalorder %s159, %s161
      %p165 = scmp.eq.s32.totalorder %s20, 0
      %p166 = por %p164, %p165
      %p167 = scmp.ne.s32.totalorder %s159, %s161
      %p168 = scmp.eq.s32.totalorder %s25, 1
      %p169 = por %p167, %p168
      %p170 = scmp.ne.s32.totalorder %s161, %s162
      %p171 = scmp.eq.s32.totalorder %s25, 0
      %p172 = por %p170, %p171
      %p173 = scmp.ne.s32.totalorder %s161, %s162
      %p174 = scmp.eq.s32.totalorder %s26, 1
      %p175 = por %p173, %p174
      %p177 = scmp.ne.s32.totalorder %s162, %s176
      %p178 = scmp.eq.s32.totalorder %s26, 0
      %p179 = por %p177, %p178
      %s180 = ssub.s32 %s20, %s27
      %p181 = scmp.eq.s32.totalorder %s180, 0
      %s183 = sadd.s32 %s182, 1
      %s184 = scalar_select %p181, %s182, %s183
      %p187 = pneg %p181
      %p188 = scmp.eq.s32.totalorder %s20, 1
      %p189 = por %p187, %p188
      %p190 = scmp.ne.s32.totalorder %s182, %s185
      %p191 = scmp.eq.s32.totalorder %s20, 0
      %p192 = por %p190, %p191
      %p193 = scmp.ne.s32.totalorder %s182, %s185
      %p194 = scmp.eq.s32.totalorder %s25, 1
      %p195 = por %p193, %p194
      %p196 = scmp.ne.s32.totalorder %s185, %s186
      %p197 = scmp.eq.s32.totalorder %s25, 0
      %p198 = por %p196, %p197
      %p199 = scmp.ne.s32.totalorder %s185, %s186
      %p200 = scmp.eq.s32.totalorder %s26, 1
      %p201 = por %p199, %p200
      %p203 = scmp.ne.s32.totalorder %s186, %s202
      %p204 = scmp.eq.s32.totalorder %s26, 0
      %p205 = por %p203, %p204
      %p206 = scmp.le.s32.totalorder 1, %s20
      %p207 = scmp.lt.s32.totalorder %s20, 3
      %p208 = pnand %p206, %p207
      %p209 = pneg %p208
      // Predicated region
      $region9: #{tpu_custom_call.1} parent=5 // pred_check
        _
      $region10: #{tpu_custom_call.1} parent=5 // pred_check_branch
        %211 = sbr.rel (%p208) target = $region12
      $region11: #{tpu_custom_call.1} parent=5 // pred_region
        %s212 = ssub.s32 %s20, 1
        // Predicated region
        $region13: #{tpu_custom_call.1} parent=11 // pred_check
          %p213 = pneg %p67
        $region14: #{tpu_custom_call.1} parent=11 // pred_check_branch
          %215 = sbr.rel (%p213) target = $region16
        $region15: #{tpu_custom_call.1} parent=11 // pred_region
          _
        $region16: #{tpu_custom_call.1} parent=11 // pred_fallthru
          _
        // Predicated region
        $region17: #{tpu_custom_call.1} parent=11 // pred_check
          %p216 = pneg %p88
        $region18: #{tpu_custom_call.1} parent=11 // pred_check_branch
          %218 = sbr.rel (%p216) target = $region20
        $region19: #{tpu_custom_call.1} parent=11 // pred_region
          _
        $region20: #{tpu_custom_call.1} parent=11 // pred_fallthru
          _
        // Predicated region
        $region21: #{tpu_custom_call.1} parent=11 // pred_check
          %p219 = pneg %p109
        $region22: #{tpu_custom_call.1} parent=11 // pred_check_branch
          %221 = sbr.rel (%p219) target = $region24
        $region23: #{tpu_custom_call.1} parent=11 // pred_region
          _
        $region24: #{tpu_custom_call.1} parent=11 // pred_fallthru
          _
        // Predicated region
        $region25: #{tpu_custom_call.1} parent=11 // pred_check
          %p222 = pneg %p130
        $region26: #{tpu_custom_call.1} parent=11 // pred_check_branch
          %224 = sbr.rel (%p222) target = $region28
        $region27: #{tpu_custom_call.1} parent=11 // pred_region
          _
        $region28: #{tpu_custom_call.1} parent=11 // pred_fallthru
          _
        // Predicated region
        $region29: #{tpu_custom_call.1} parent=11 // pred_check
          %p225 = pneg %p151
        $region30: #{tpu_custom_call.1} parent=11 // pred_check_branch
          %227 = sbr.rel (%p225) target = $region32
        $region31: #{tpu_custom_call.1} parent=11 // pred_region
          _
        $region32: #{tpu_custom_call.1} parent=11 // pred_fallthru
          _
        // Predicated region
        $region33: #{tpu_custom_call.1} parent=11 // pred_check
          %p228 = pneg %p172
        $region34: #{tpu_custom_call.1} parent=11 // pred_check_branch
          %230 = sbr.rel (%p228) target = $region36
        $region35: #{tpu_custom_call.1} parent=11 // pred_region
          _
        $region36: #{tpu_custom_call.1} parent=11 // pred_fallthru
          _
      $region12: #{tpu_custom_call.1} parent=5 // pred_fallthru
        _
      %p231 = scmp.lt.s32.totalorder %s20, 2
      // Predicated region
      $region37: #{tpu_custom_call.1} parent=5 // pred_check
        %p232 = pneg %p231
      $region38: #{tpu_custom_call.1} parent=5 // pred_check_branch
        %234 = sbr.rel (%p232) target = $region40
      $region39: #{tpu_custom_call.1} parent=5 // pred_region
        // Predicated region
        $region41: #{tpu_custom_call.1} parent=39 // pred_check
          %p235 = pneg %p40
        $region42: #{tpu_custom_call.1} parent=39 // pred_check_branch
          %237 = sbr.rel (%p235) target = $region44
        $region43: #{tpu_custom_call.1} parent=39 // pred_region
          %s238 = sand.u32 %s30, 1
          %s239 = scalar_lea.sflag [#allocation4], %s238
          %s240 = sand.u32 %s30, 1
          %s241 = smul.addr %s240, 64
          %s242 = scalar_lea.vmem [#allocation3], %s241
          %s244 = ssub.s32 1024, 1024
          %245 = vsyncadd %s239, %s244
          %s246 = smul.addr %s20, 8
          %s247 = smul.addr %s246, 128
          %s248 = scalar_lea.hbm %s0, %s247
          %s249 = sshll.u32 %s242, 4
          %s250 = int_to_ptr.vmem [resolvable:$true] %s249
          %255 = dma.hbm_to_vmem [thread:$0]  %s248, 1024, %s250, %s239, 256, 256, 16
        $region44: #{tpu_custom_call.1} parent=39 // pred_fallthru
          _
      $region40: #{tpu_custom_call.1} parent=5 // pred_fallthru
        _
      %p256 = scmp.le.s32.totalorder 1, %s20
      %p257 = scmp.lt.s32.totalorder %s20, 3
      %p258 = pnand %p256, %p257
      %p259 = pneg %p258
      // Predicated region
      $region45: #{tpu_custom_call.1} parent=5 // pred_check
        _
      $region46: #{tpu_custom_call.1} parent=5 // pred_check_branch
        %261 = sbr.rel (%p258) target = $region48
      $region47: #{tpu_custom_call.1} parent=5 // pred_region
        %s262 = ssub.s32 %s20, 1
        %s263 = sand.u32 %s33, 1
        %s264 = scalar_lea.sflag [#allocation4], %s263
        %s265 = sand.u32 %s33, 1
        %s266 = smul.addr %s265, 64
        %s267 = scalar_lea.vmem [#allocation3], %s266
        // Predicated region
        $region49: #{tpu_custom_call.1} parent=47 // pred_check
          %p268 = pneg %p46
        $region50: #{tpu_custom_call.1} parent=47 // pred_check_branch
          %270 = sbr.rel (%p268) target = $region52
        $region51: #{tpu_custom_call.1} parent=47 // pred_region
          %271 = dma.done %s264, 1024
        $region52: #{tpu_custom_call.1} parent=47 // pred_fallthru
          _
        %s272 = sand.u32 %s33, 1
        %s273 = scalar_lea.sflag [#allocation4], %s272
        %s274 = sand.u32 %s33, 1
        %s275 = smul.addr %s274, 64
        %s276 = scalar_lea.vmem [#allocation3], %s275
        %p277 = pneg %p46
        %p278 = pneg %p43
        %p279 = pneg %p67
        %p280 = pneg %p64
        %p281 = pneg %p88
        %p282 = pneg %p85
        %p283 = pneg %p109
        %p284 = pneg %p106
        %p285 = pneg %p130
        %p286 = pneg %p127
        %p287 = pneg %p151
        %p288 = pneg %p148
        %p289 = pneg %p172
        %p290 = pneg %p169
        %p291 = pneg %p198
        %p292 = pneg %p195
        %s293 = sand.u32 %s185, 1
        %s294 = scalar_lea.sflag [#allocation5], %s293
        %s295 = sand.u32 %s185, 1
        %s296 = smul.addr %s295, 64
        %s297 = scalar_lea.vmem [#allocation6], %s296
        %v298 = vld [vmem:[%s267] sm:$0xff]
        %v299 = vld [vmem:[%s267 + $0x8] sm:$0xff]
        %v300 = vld [vmem:[%s267 + $0x10] sm:$0xff]
        %v301 = vld [vmem:[%s267 + $0x18] sm:$0xff]
        %v302 = vld [vmem:[%s267 + $0x20] sm:$0xff]
        %v303 = vld [vmem:[%s267 + $0x28] sm:$0xff]
        %v304 = vld [vmem:[%s267 + $0x30] sm:$0xff]
        %v305 = vld [vmem:[%s267 + $0x38] sm:$0xff]
        %v306 = vadd.f32 %v298, %v299
        %307 = vadd.xlane.f32.xlu0 %v306
        %v308 = vpop.xlane.xlu0 %307
        %v309 = vadd.f32 %v300, %v301
        %310 = vadd.xlane.f32.xlu0 %v309
        %v311 = vpop.xlane.xlu0 %310
        %v312 = vadd.f32 %v302, %v303
        %313 = vadd.xlane.f32.xlu0 %v312
        %v314 = vpop.xlane.xlu0 %313
        %v315 = vadd.f32 %v304, %v305
        %316 = vadd.xlane.f32.xlu0 %v315
        %v317 = vpop.xlane.xlu0 %316
        %v318 = vmul.f32 %v308, 0.00390625
        %v319 = vmul.f32 %v311, 0.00390625
        %v320 = vmul.f32 %v314, 0.00390625
        %v321 = vmul.f32 %v317, 0.00390625
        %v322 = vld [vmem:[%s1] sm:$0xff]
        %v323 = vld [vmem:[%s1 + $0x8] sm:$0xff]
        %v324 = vld [vmem:[%s1 + $0x10] sm:$0xff]
        %v325 = vld [vmem:[%s1 + $0x18] sm:$0xff]
        %v326 = vld [vmem:[%s2] sm:$0x1]
        %v331 = vlaneseq
        %v332 = vand.u32 %v331, 127
        %v333 = vlaneseq
        %v334 = vshrl.u32 %v333, 7
        %v335 = vsub.s32 %v332, %v334
        %v336 = vrot.slane %v318, %v335
        %v337 = vadd.s32 %v332, 4294967288
        %v338 = vlaneseq
        %v339 = vshrl.u32 %v338, 7
        %v340 = vsub.s32 %v337, %v339
        %v341 = vrot.slane %v319, %v340
        %vm342 = vcmask 130112
        %v343 = vsel %vm342, %v341, %v336
        %v344 = vadd.s32 %v332, 4294967280
        %v345 = vlaneseq
        %v346 = vshrl.u32 %v345, 7
        %v347 = vsub.s32 %v344, %v346
        %v348 = vrot.slane %v320, %v347
        %vm349 = vcmask 195712
        %v350 = vsel %vm349, %v348, %v343
        %v351 = vadd.s32 %v332, 4294967272
        %v352 = vlaneseq
        %v353 = vshrl.u32 %v352, 7
        %v354 = vsub.s32 %v351, %v353
        %v355 = vrot.slane %v321, %v354
        %vm356 = vcmask 261312
        %v357 = vsel %vm356, %v355, %v350
        %vm358 = vcmask 261120
        %v359 = vsel %vm358, %v357, 0
        %361 = vmatprep.subr.mxu0 0.0
        %362 = vmatpush1.msra.mxu0 %v322
        %363 = vmatprep.subr.mxu0 0.0
        %364 = vmatpush1.msra.mxu0 %v323
        %365 = vmatprep.subr.mxu0 0.0
        %366 = vmatpush1.msra.mxu0 %v324
        %367 = vmatprep.subr.mxu0 0.0
        %368 = vmatpush1.msra.mxu0 %v325
        %369 = vmatprep.subr.mxu0 0.0
        %370 = vmatpush1.msra.mxu0 0.0
        %371 = vmatprep.subr.mxu0 0.0
        %372 = vmatpush1.msra.mxu0 0.0
        %373 = vmatprep.subr.mxu0 0.0
        %374 = vmatpush1.msra.mxu0 0.0
        %375 = vmatprep.subr.mxu0 0.0
        %376 = vmatpush1.msra.mxu0 0.0
        %377 = vmatprep.subr.mxu0 0.0
        %378 = vmatpush1.msra.mxu0 0.0
        %379 = vmatprep.subr.mxu0 0.0
        %380 = vmatpush1.msra.mxu0 0.0
        %381 = vmatprep.subr.mxu0 0.0
        %382 = vmatpush1.msra.mxu0 0.0
        %383 = vmatprep.subr.mxu0 0.0
        %384 = vmatpush1.msra.mxu0 0.0
        %385 = vmatprep.subr.mxu0 0.0
        %386 = vmatpush1.msra.mxu0 0.0
        %387 = vmatprep.subr.mxu0 0.0
        %388 = vmatpush1.msra.mxu0 0.0
        %389 = vmatprep.subr.mxu0 0.0
        %390 = vmatpush1.msra.mxu0 0.0
        %391 = vmatprep.subr.mxu0 0.0
        %392 = vmatpush1.msra.mxu0 0.0
        %393 = vmatprep.subr.mxu0 0.0
        %394 = vmatpush1.msra.mxu0 0.0
        %395 = vmatprep.subr.mxu0 0.0
        %396 = vmatpush1.msra.mxu0 0.0
        %397 = vmatprep.subr.mxu0 0.0
        %398 = vmatpush1.msra.mxu0 0.0
        %399 = vmatprep.subr.mxu0 0.0
        %400 = vmatpush1.msra.mxu0 0.0
        %401 = vmatprep.subr.mxu0 0.0
        %402 = vmatpush1.msra.mxu0 0.0
        %403 = vmatprep.subr.mxu0 0.0
        %404 = vmatpush1.msra.mxu0 0.0
        %405 = vmatprep.subr.mxu0 0.0
        %406 = vmatpush1.msra.mxu0 0.0
        %407 = vmatprep.subr.mxu0 0.0
        %408 = vmatpush1.msra.mxu0 0.0
        %409 = vmatprep.subr.mxu0 0.0
        %410 = vmatpush1.msra.mxu0 0.0
        %411 = vmatprep.subr.mxu0 0.0
        %412 = vmatpush1.msra.mxu0 0.0
        %413 = vmatprep.subr.mxu0 0.0
        %414 = vmatpush1.msra.mxu0 0.0
        %415 = vmatprep.subr.mxu0 0.0
        %416 = vmatpush1.msra.mxu0 0.0
        %417 = vmatprep.subr.mxu0 0.0
        %418 = vmatpush1.msra.mxu0 0.0
        %419 = vmatprep.subr.mxu0 0.0
        %420 = vmatpush1.msra.mxu0 0.0
        %421 = vmatprep.subr.mxu0 0.0
        %422 = vmatpush1.msra.mxu0 0.0
        %423 = vmatprep.subr.mxu0 0.0
        %424 = vmatpush1.msra.mxu0 0.0
        %425 = vmatprep.mubr.f32.mxu0 0.0
        %426 = vmatmul.mubr.f32.gmra.mrb[0].mxu0 %v359
        %v427 = vpop.f32.mrb[0].mxu0
        %v428 = vadd.f32 %v326, %v427
        %v429 = vpop.f32.mrb[0].mxu0
        %430 = vdwg.mxu0
        %v431 = vmax.f32 %v428, 0.0
        %v432 = vld [vmem:[%s3] sm:$0x3]
        %v433 = vld [vmem:[%s4] sm:$0x1]
        %vm434 = vcmask 15360
        %v436 = vsel %vm434, %v431, 0
        %vm438 = vcmask 1041408
        %v440 = vsel %vm438, %v432, 0
        %442 = vmatprep.subr.mxu0 0.0
        %443 = vmatpush1.msra.mxu0 %v440
        %444 = vmatprep.subr.mxu0 0.0
        %445 = vmatpush1.msra.mxu0 0.0
        %446 = vmatprep.subr.mxu0 0.0
        %447 = vmatpush1.msra.mxu0 0.0
        %448 = vmatprep.subr.mxu0 0.0
        %449 = vmatpush1.msra.mxu0 0.0
        %450 = vmatprep.subr.mxu0 0.0
        %451 = vmatpush1.msra.mxu0 0.0
        %452 = vmatprep.subr.mxu0 0.0
        %453 = vmatpush1.msra.mxu0 0.0
        %454 = vmatprep.subr.mxu0 0.0
        %455 = vmatpush1.msra.mxu0 0.0
        %456 = vmatprep.subr.mxu0 0.0
        %457 = vmatpush1.msra.mxu0 0.0
        %458 = vmatprep.subr.mxu0 0.0
        %459 = vmatpush1.msra.mxu0 0.0
        %460 = vmatprep.subr.mxu0 0.0
        %461 = vmatpush1.msra.mxu0 0.0
        %462 = vmatprep.subr.mxu0 0.0
        %463 = vmatpush1.msra.mxu0 0.0
        %464 = vmatprep.subr.mxu0 0.0
        %465 = vmatpush1.msra.mxu0 0.0
        %466 = vmatprep.subr.mxu0 0.0
        %467 = vmatpush1.msra.mxu0 0.0
        %468 = vmatprep.subr.mxu0 0.0
        %469 = vmatpush1.msra.mxu0 0.0
        %470 = vmatprep.subr.mxu0 0.0
        %471 = vmatpush1.msra.mxu0 0.0
        %472 = vmatprep.subr.mxu0 0.0
        %473 = vmatpush1.msra.mxu0 0.0
        %474 = vmatprep.subr.mxu0 0.0
        %475 = vmatpush1.msra.mxu0 0.0
        %476 = vmatprep.subr.mxu0 0.0
        %477 = vmatpush1.msra.mxu0 0.0
        %478 = vmatprep.subr.mxu0 0.0
        %479 = vmatpush1.msra.mxu0 0.0
        %480 = vmatprep.subr.mxu0 0.0
        %481 = vmatpush1.msra.mxu0 0.0
        %482 = vmatprep.subr.mxu0 0.0
        %483 = vmatpush1.msra.mxu0 0.0
        %484 = vmatprep.subr.mxu0 0.0
        %485 = vmatpush1.msra.mxu0 0.0
        %486 = vmatprep.subr.mxu0 0.0
        %487 = vmatpush1.msra.mxu0 0.0
        %488 = vmatprep.subr.mxu0 0.0
        %489 = vmatpush1.msra.mxu0 0.0
        %490 = vmatprep.subr.mxu0 0.0
        %491 = vmatpush1.msra.mxu0 0.0
        %492 = vmatprep.subr.mxu0 0.0
        %493 = vmatpush1.msra.mxu0 0.0
        %494 = vmatprep.subr.mxu0 0.0
        %495 = vmatpush1.msra.mxu0 0.0
        %496 = vmatprep.subr.mxu0 0.0
        %497 = vmatpush1.msra.mxu0 0.0
        %498 = vmatprep.subr.mxu0 0.0
        %499 = vmatpush1.msra.mxu0 0.0
        %500 = vmatprep.subr.mxu0 0.0
        %501 = vmatpush1.msra.mxu0 0.0
        %502 = vmatprep.subr.mxu0 0.0
        %503 = vmatpush1.msra.mxu0 0.0
        %504 = vmatprep.subr.mxu0 0.0
        %505 = vmatpush1.msra.mxu0 0.0
        %506 = vmatprep.mubr.f32.mxu0 0.0
        %507 = vmatmul.mubr.f32.gmra.mrb[0].mxu0 %v436
        %v508 = vpop.f32.mrb[0].mxu0
        %v509 = vadd.f32 %v433, %v508
        %v510 = vpop.f32.mrb[0].mxu0
        %511 = vdwg.mxu0
        %v512 = vxor.u32 %v509, 2147483648
        %v513 = vmul.f32 %v512, 1.442695
        %v514 = vpow.pop %v513
        %v515 = vadd.f32 %v514, 1.0
        %v516 = vrcp.pop %v515
        %v517 = vmul.f32 1.0, %v516
        %v518 = vlaneseq
        %v519 = vshrl.u32 %v518, 7
        %v520 = vsub.s32 0, %v519
        %v521 = vrot.slane %v517, %v520
        %523 = vbcast.lane.b32.xlu0 %v521, 256
        %v524 = vpop.permute.xlu0 %523
        %s526 = sor.u32 256, 8
        %527 = vbcast.lane.b32.xlu0 %v521, %s526
        %v528 = vpop.permute.xlu0 %527
        %s530 = sor.u32 256, 16
        %531 = vbcast.lane.b32.xlu0 %v521, %s530
        %v532 = vpop.permute.xlu0 %531
        %s534 = sor.u32 256, 24
        %535 = vbcast.lane.b32.xlu0 %v521, %s534
        %v536 = vpop.permute.xlu0 %535
        %v537 = vld [vmem:[%s5] sm:$0xff]
        %v538 = vld [vmem:[%s5 + $0x8] sm:$0xff]
        %v539 = vld [vmem:[%s5 + $0x10] sm:$0xff]
        %v540 = vld [vmem:[%s5 + $0x18] sm:$0xff]
        %542 = vset.pattern.permute.xlu0 0
        %543 = vperm.xlu0 %542, %v537
        %v544 = vpop.permute.xlu0 %543
        %547 = vset.pattern.permute.xlu0 0
        %548 = vperm.xlu0 %547, %v538
        %v549 = vpop.permute.xlu0 %548
        %552 = vset.pattern.permute.xlu0 0
        %553 = vperm.xlu0 %552, %v539
        %v554 = vpop.permute.xlu0 %553
        %557 = vset.pattern.permute.xlu0 0
        %558 = vperm.xlu0 %557, %v540
        %v559 = vpop.permute.xlu0 %558
        %v561 = vmul.f32 %v298, %v544
        %v562 = vmul.f32 %v299, %v544
        %v563 = vmul.f32 %v300, %v549
        %v564 = vmul.f32 %v301, %v549
        %v565 = vmul.f32 %v302, %v554
        %v566 = vmul.f32 %v303, %v554
        %v567 = vmul.f32 %v304, %v559
        %v568 = vmul.f32 %v305, %v559
        %v569 = vadd.f32 %v561, %v563
        %v570 = vadd.f32 %v569, %v565
        %v571 = vadd.f32 %v570, %v567
        %v572 = vrot.slane %v571, 4
        %v573 = vadd.f32 %v571, %v572
        %v574 = vrot.slane %v573, 2
        %v575 = vadd.f32 %v573, %v574
        %v576 = vrot.slane %v575, 1
        %v577 = vadd.f32 %v575, %v576
        %v578 = vadd.f32 %v562, %v564
        %v579 = vadd.f32 %v578, %v566
        %v580 = vadd.f32 %v579, %v568
        %v581 = vrot.slane %v580, 4
        %v582 = vadd.f32 %v580, %v581
        %v583 = vrot.slane %v582, 2
        %v584 = vadd.f32 %v582, %v583
        %v585 = vrot.slane %v584, 1
        %v586 = vadd.f32 %v584, %v585
        %s587 = sld [smem:[#allocation2]]
        %v588 = vstv %s587
        %v589 = vadd.f32 %v577, %v588
        %v590 = vadd.f32 %v586, %v588
        %v591 = vxor.u32 %v589, 2147483648
        %v592 = vxor.u32 %v590, 2147483648
        %v593 = vmul.f32 %v591, 1.442695
        %v594 = vpow.pop %v593
        %v595 = vmul.f32 %v592, 1.442695
        %v596 = vpow.pop %v595
        %v597 = vadd.f32 %v594, 1.0
        %v598 = vadd.f32 %v596, 1.0
        %v599 = vrcp.pop %v597
        %v600 = vmul.f32 1.0, %v599
        %v601 = vrcp.pop %v598
        %v602 = vmul.f32 1.0, %v601
        %v603 = vmul.f32 %v298, %v524
        %v604 = vmul.f32 %v299, %v524
        %v605 = vmul.f32 %v300, %v528
        %v606 = vmul.f32 %v301, %v528
        %v607 = vmul.f32 %v302, %v532
        %v608 = vmul.f32 %v303, %v532
        %v609 = vmul.f32 %v304, %v536
        %v610 = vmul.f32 %v305, %v536
        %v611 = vmul.f32 %v298, %v600
        %v612 = vmul.f32 %v299, %v602
        %v613 = vmul.f32 %v300, %v600
        %v614 = vmul.f32 %v301, %v602
        %v615 = vmul.f32 %v302, %v600
        %v616 = vmul.f32 %v303, %v602
        %v617 = vmul.f32 %v304, %v600
        %v618 = vmul.f32 %v305, %v602
        %v619 = vmax.f32 %v603, %v611
        %v620 = vmax.f32 %v604, %v612
        %v621 = vmax.f32 %v605, %v613
        %v622 = vmax.f32 %v606, %v614
        %v623 = vmax.f32 %v607, %v615
        %v624 = vmax.f32 %v608, %v616
        %v625 = vmax.f32 %v609, %v617
        %v626 = vmax.f32 %v610, %v618
        %627 = vst [vmem:[%s297] sm:$0xff] %v619
        %628 = vst [vmem:[%s297 + $0x8] sm:$0xff] %v620
        %629 = vst [vmem:[%s297 + $0x10] sm:$0xff] %v621
        %630 = vst [vmem:[%s297 + $0x18] sm:$0xff] %v622
        %631 = vst [vmem:[%s297 + $0x20] sm:$0xff] %v623
        %632 = vst [vmem:[%s297 + $0x28] sm:$0xff] %v624
        %633 = vst [vmem:[%s297 + $0x30] sm:$0xff] %v625
        %634 = vst [vmem:[%s297 + $0x38] sm:$0xff] %v626
        %s635 = sand.u32 %s185, 1
        %s636 = scalar_lea.sflag [#allocation5], %s635
        %s637 = sand.u32 %s185, 1
        %s638 = smul.addr %s637, 64
        %s639 = scalar_lea.vmem [#allocation6], %s638
        // Predicated region
        $region53: #{tpu_custom_call.1} parent=47 // pred_check
          %p640 = pneg %p195
        $region54: #{tpu_custom_call.1} parent=47 // pred_check_branch
          %642 = sbr.rel (%p640) target = $region56
        $region55: #{tpu_custom_call.1} parent=47 // pred_region
          %s644 = ssub.s32 1024, 1024
          %645 = vsyncadd %s636, %s644
          %s646 = smul.addr %s25, 8
          %s647 = smul.addr %s646, 128
          %s648 = scalar_lea.hbm %s7, %s647
          %s649 = sshll.u32 %s639, 4
          %s650 = int_to_ptr.vmem [resolvable:$true] %s649
          %655 = dma.vmem_to_hbm [thread:$0]  %s650, 1024, %s648, %s636, 256, 256, 16
        $region56: #{tpu_custom_call.1} parent=47 // pred_fallthru
          _
      $region48: #{tpu_custom_call.1} parent=5 // pred_fallthru
        _
      %p656 = scmp.le.s32.totalorder 2, %s20
      // Predicated region
      $region57: #{tpu_custom_call.1} parent=5 // pred_check
        %p657 = pneg %p656
      $region58: #{tpu_custom_call.1} parent=5 // pred_check_branch
        %659 = sbr.rel (%p657) target = $region60
      $region59: #{tpu_custom_call.1} parent=5 // pred_region
        %s660 = ssub.s32 %s20, 2
        // Predicated region
        $region61: #{tpu_custom_call.1} parent=59 // pred_check
          %p661 = pneg %p201
        $region62: #{tpu_custom_call.1} parent=59 // pred_check_branch
          %663 = sbr.rel (%p661) target = $region64
        $region63: #{tpu_custom_call.1} parent=59 // pred_region
          %s664 = sand.u32 %s186, 1
          %s665 = scalar_lea.sflag [#allocation5], %s664
          %s666 = sand.u32 %s186, 1
          %s667 = smul.addr %s666, 64
          %s668 = scalar_lea.vmem [#allocation6], %s667
          %669 = dma.done %s665, 1024
        $region64: #{tpu_custom_call.1} parent=59 // pred_fallthru
          _
      $region60: #{tpu_custom_call.1} parent=5 // pred_fallthru
        _
    $region6: #{tpu_custom_call.1} parent=1 // loop_footer
      %s24 = sadd.s32 1, %s20
    $region7: #{tpu_custom_call.1} parent=1 // loop_footer_branch
      %19 = sbr.rel target = $region3
    $region8: #{tpu_custom_call.1} parent=1 // loop_exit
      _
    %670 = vsyncpa [#allocation4], 1
    %s671 = scalar_lea.sflag [#allocation4], 1
    %672 = vsyncpa %s671, 1
    %673 = vsyncpa [#allocation5], 1
    %s674 = scalar_lea.sflag [#allocation5], 1
    %675 = vsyncpa %s674, 1

</llo_original>
